<compile_context>
chip_gen: v7x
topology: tpu7x:2x2x1
jax: 0.10.0
libtpu: 0.0.40
codegen_flags: <defaults>
</compile_context>

<pallas_src>
import functools

import jax
import jax.numpy as jnp
from jax.experimental import pallas as pl
from jax.experimental.pallas import tpu as pltpu


def _rmsnorm_kernel(x_ref, g_ref, o_ref, *, eps):
    x = x_ref[...]                                   # (ROW_TILE, D), input dtype
    xf = x.astype(jnp.float32)                       # mean accumulation in fp32
    ms = jnp.mean(xf * xf, axis=-1, keepdims=True)   # (ROW_TILE, 1)
    # Match PyTorch: irms = rsqrt(mean(x.float()**2) + eps).type_as(x)
    irms = jax.lax.rsqrt(ms + eps).astype(x.dtype)
    o_ref[...] = (g_ref[...] * x * irms).astype(o_ref.dtype)


def _row_alignment(dtype):
    """Sublane packing: rows per vreg group for the given element width."""
    itemsize = jnp.dtype(dtype).itemsize
    if itemsize >= 4:
        return 8
    if itemsize == 2:
        return 16
    return 32


def _pick_row_tile(rows, d_model, dtype,
                   vmem_budget_bytes=24 * 1024 * 1024, max_tile=1024):
    """Largest dtype-aligned row tile whose VMEM footprint fits the budget.

    Footprint per row ~= 2 double-buffered input blocks + 2 output blocks
    (in the input dtype) + ~8 bytes/element of fp32 temporaries (xf, products).
    """
    align = _row_alignment(dtype)
    itemsize = jnp.dtype(dtype).itemsize
    bytes_per_row = d_model * (4 * itemsize + 8)
    tile = vmem_budget_bytes // max(bytes_per_row, 1)
    tile = max(align, min(max_tile, tile))
    tile = (tile // align) * align
    # Never tile beyond the (alignment-rounded) number of rows we actually have.
    rows_aligned = ((rows + align - 1) // align) * align
    return min(tile, rows_aligned)


def rmsnorm(x, gamma, eps=1e-5, row_tile=None):
    """RMSNorm over the last axis of x, matching the PyTorch module semantics."""
    orig_shape = x.shape
    d_model = orig_shape[-1]
    rows = 1
    for s in orig_shape[:-1]:
        rows *= s
    x2d = x.reshape(rows, d_model)
    g2d = gamma.reshape(1, d_model)

    if row_tile is None:
        row_tile = _pick_row_tile(rows, d_model, x.dtype)

    # Tail handling: pad rows to a multiple of row_tile, slice back at the end.
    # Zero rows normalize to zero (rsqrt(eps) is finite), so padding is safe.
    n_blocks = pl.cdiv(rows, row_tile)
    rows_padded = n_blocks * row_tile
    if rows_padded != rows:
        x2d = jnp.pad(x2d, ((0, rows_padded - rows), (0, 0)))

    out = pl.pallas_call(
        functools.partial(_rmsnorm_kernel, eps=eps),
        out_shape=jax.ShapeDtypeStruct((rows_padded, d_model), x.dtype),
        grid_spec=pltpu.PrefetchScalarGridSpec(
            num_scalar_prefetch=0,
            grid=(n_blocks,),
            in_specs=[
                pl.BlockSpec((row_tile, d_model), lambda i: (i, 0)),
                pl.BlockSpec((1, d_model), lambda i: (0, 0)),  # gamma: resident
            ],
            out_specs=pl.BlockSpec((row_tile, d_model), lambda i: (i, 0)),
        ),
        compiler_params=pltpu.CompilerParams(
            dimension_semantics=("parallel",),
            vmem_limit_bytes=48 * 1024 * 1024,
        ),
    )(x2d, g2d)

    if rows_padded != rows:
        out = out[:rows]
    return out.reshape(orig_shape)


def rmsnorm_ref(x, gamma, eps=1e-5):
    xf = x.astype(jnp.float32)
    irms = jax.lax.rsqrt(
        jnp.mean(jnp.square(xf), axis=-1, keepdims=True) + eps
    ).astype(x.dtype)
    return (gamma * x * irms).astype(x.dtype)


if __name__ == "__main__":
    key = jax.random.PRNGKey(0)
    k1, k2, k3, k4 = jax.random.split(key, 4)

    # Main check: small but lane-aligned shape (d_model multiple of 128).
    batch, seq, d_model = 2, 8, 128
    x = jax.random.normal(k1, (batch, seq, d_model), dtype=jnp.float32)
    gamma = 1.0 + 0.1 * jax.random.normal(k2, (d_model,), dtype=jnp.float32)

    out = jax.block_until_ready(rmsnorm(x, gamma, eps=1e-5))
    ref = rmsnorm_ref(x, gamma, eps=1e-5)
    assert out.shape == x.shape and out.dtype == x.dtype
    assert jnp.allclose(out, ref, atol=1e-5, rtol=1e-5), "f32 mismatch vs reference"

    # Tail-handling check: rows (3*5=15) not divisible by the row tile.
    x_odd = jax.random.normal(k3, (3, 5, d_model), dtype=jnp.float32)
    out_odd = jax.block_until_ready(rmsnorm(x_odd, gamma, eps=1e-5, row_tile=8))
    ref_odd = rmsnorm_ref(x_odd, gamma, eps=1e-5)
    assert jnp.allclose(out_odd, ref_odd, atol=1e-5, rtol=1e-5), "tail mismatch"

    # bf16 check: dtype-aware tile alignment + .type_as(x) semantics preserved.
    x_bf = jax.random.normal(k4, (batch, seq, d_model), dtype=jnp.bfloat16)
    g_bf = gamma.astype(jnp.bfloat16)
    out_bf = jax.block_until_ready(rmsnorm(x_bf, g_bf, eps=1e-5))
    ref_bf = rmsnorm_ref(x_bf, g_bf, eps=1e-5)
    assert out_bf.dtype == jnp.bfloat16
    assert jnp.allclose(out_bf.astype(jnp.float32), ref_bf.astype(jnp.float32),
                        atol=2e-2, rtol=2e-2), "bf16 mismatch vs reference"

    print("KERNEL_OK")
</pallas_src>

<mosaic_0001>
module attributes {stable_mosaic.version = 11 : i64} {
  func.func @_rmsnorm_kernel(%arg0: i32, %arg1: memref<16x128xf32, #tpu.memory_space<vmem>>, %arg2: memref<1x128xf32, #tpu.memory_space<vmem>>, %arg3: memref<16x128xf32, #tpu.memory_space<vmem>>) attributes {dimension_semantics = [#tpu.dimension_semantics<parallel>], iteration_bounds = array<i64: 1>, scalar_prefetch = 0 : i64, scratch_operands = 0 : i64, tpu.core_type = #tpu.core_type<tc>, window_params = [{transform_indices = @transform_0, window_bounds = array<i64: 16, 128>}, {pipeline_mode = #tpu.pipeline_mode<synchronous>, transform_indices = @transform_1, window_bounds = array<i64: 1, 128>}, {transform_indices = @transform_2, window_bounds = array<i64: 16, 128>}]} {
    %c0 = arith.constant 0 : index
    %c0_0 = arith.constant 0 : index
    %0 = vector.load %arg1[%c0, %c0_0] : memref<16x128xf32, #tpu.memory_space<vmem>>, vector<16x128xf32>
    %1 = arith.mulf %0, %0 : vector<16x128xf32>
    %cst = arith.constant dense<0.000000e+00> : vector<16xf32>
    %2 = vector.multi_reduction <add>, %1, %cst [1] : vector<16x128xf32> to vector<16xf32>
    %3 = vector.shape_cast %2 : vector<16xf32> to vector<16x1xf32>
    %cst_1 = arith.constant 1.280000e+02 : f32
    %4 = vector.broadcast %cst_1 : f32 to vector<16x1xf32>
    %5 = arith.divf %3, %4 : vector<16x1xf32>
    %cst_2 = arith.constant 9.99999974E-6 : f32
    %6 = vector.broadcast %cst_2 : f32 to vector<16x1xf32>
    %7 = arith.addf %5, %6 : vector<16x1xf32>
    %8 = math.rsqrt %7 : vector<16x1xf32>
    %c0_3 = arith.constant 0 : index
    %c0_4 = arith.constant 0 : index
    %9 = vector.load %arg2[%c0_3, %c0_4] : memref<1x128xf32, #tpu.memory_space<vmem>>, vector<1x128xf32>
    %10 = vector.broadcast %9 : vector<1x128xf32> to vector<16x128xf32>
    %11 = arith.mulf %10, %0 : vector<16x128xf32>
    %12 = vector.broadcast %8 : vector<16x1xf32> to vector<16x128xf32>
    %13 = arith.mulf %11, %12 : vector<16x128xf32>
    %c0_5 = arith.constant 0 : index
    %c0_6 = arith.constant 0 : index
    %14 = vector.load %arg3[%c0_5, %c0_6] : memref<16x128xf32, #tpu.memory_space<vmem>>, vector<16x128xf32>
    tpu.vector_store %arg3[%c0_5, %c0_6], %13 {strides = array<i32>} : memref<16x128xf32, #tpu.memory_space<vmem>>, vector<16x128xf32>,
    return
  }
  func.func @transform_0(%arg0: i32) -> (i32, i32) {
    %c0_i32 = arith.constant 0 : i32
    %c0_i32_0 = arith.constant 0 : i32
    return %arg0, %c0_i32 : i32, i32
  }
  func.func @transform_1(%arg0: i32) -> (i32, i32) {
    %c0_i32 = arith.constant 0 : i32
    %c0_i32_0 = arith.constant 0 : i32
    %c0_i32_1 = arith.constant 0 : i32
    return %c0_i32, %c0_i32_0 : i32, i32
  }
  func.func @transform_2(%arg0: i32) -> (i32, i32) {
    %c0_i32 = arith.constant 0 : i32
    %c0_i32_0 = arith.constant 0 : i32
    return %arg0, %c0_i32 : i32, i32
  }
}

</mosaic_0001>

<llo_original>
// kernel: tpu_custom_call.1
$region0: #{tpu_custom_call.1}
  #allocation0 [shape = 'u32[]', space=smem, size = 0x4, offset = 0x4, fixed_abs, tag = 'smem constant byte address 0x4 - core index']
  #allocation1 [shape = 'u32[144,128]{1,0:T(1,128)}', space=vmem, size = 0x12000, scoped, tag = 'internal scratch']
  %s0 = inlined_call_operand.hbm [shape: f32[16,128], index: 0, kind: input, shape index: {}]
  %s1 = inlined_call_operand.vmem [shape: f32[1,128], index: 1, kind: input, shape index: {}]
  %s2 = inlined_call_operand.hbm [shape: f32[16,128], index: 2, kind: output, shape index: {}]
  %s3 = sld [smem:[#allocation0]]
  $region22: #{tpu_custom_call.1} parent=0
    _
  %s5 = ssub.s32 1, %s3
  %s6 = scalar_select 0, %s5, %s3
  $region1: #{tpu_custom_call.1} parent=0
    #allocation2 [shape = 'u8[8192]{0}', space=vmem, size = 0x2000, scoped, tag = 'input window, operand 0, single buffered']
    #allocation3 [shape = 's32[1]{0}', space=sflag, size = 0x4, scoped, tag = 'scoped memory for tpu_custom_call.1']
    #allocation4 [shape = 's32[1]{0}', space=sflag, size = 0x4, scoped, tag = 'scoped memory for tpu_custom_call.1']
    #allocation5 [shape = 'u8[8192]{0}', space=vmem, size = 0x2000, scoped, tag = 'output window, operand 0, single buffered']
    %7 = vsyncpa [#allocation3], 0
    %8 = vsyncpa [#allocation4], 0
    // Predicated region
    $region2: #{tpu_custom_call.1} parent=1 // pred_check
      _
    $region3: #{tpu_custom_call.1} parent=1 // pred_check_branch
      %10 = sbr.rel (0) target = $region5
    $region4: #{tpu_custom_call.1} parent=1 // pred_region
      %s12 = ssub.s32 256, 256
      %13 = vsyncadd [#allocation3], %s12
      %s14 = sshll.u32 [#allocation2], 4
      %s15 = int_to_ptr.vmem [resolvable:$true] %s14
      %20 = dma.hbm_to_vmem [thread:$0]  %s0, 256, %s15, [#allocation3], 128, 128, 8
    $region5: #{tpu_custom_call.1} parent=1 // pred_fallthru
      _
    // Predicated region
    $region6: #{tpu_custom_call.1} parent=1 // pred_check
      _
    $region7: #{tpu_custom_call.1} parent=1 // pred_check_branch
      %22 = sbr.rel (0) target = $region9
    $region8: #{tpu_custom_call.1} parent=1 // pred_region
      _
    $region9: #{tpu_custom_call.1} parent=1 // pred_fallthru
      _
    // Predicated region
    $region10: #{tpu_custom_call.1} parent=1 // pred_check
      _
    $region11: #{tpu_custom_call.1} parent=1 // pred_check_branch
      %24 = sbr.rel (0) target = $region13
    $region12: #{tpu_custom_call.1} parent=1 // pred_region
      %25 = dma.done [#allocation3], 256
    $region13: #{tpu_custom_call.1} parent=1 // pred_fallthru
      _
    %v26 = vld [vmem:[#allocation2] sm:$0xff]
    %v27 = vld [vmem:[#allocation2 + $0x8] sm:$0xff]
    %v28 = vmul.f32 %v26, %v26
    %v29 = vmul.f32 %v27, %v27
    %30 = vadd.xlane.f32.xlu0 %v28
    %v31 = vpop.xlane.xlu0 %30
    %32 = vadd.xlane.f32.xlu0 %v29
    %v33 = vpop.xlane.xlu0 %32
    %v34 = vrcp.pop 128.0
    %v35 = vmul.f32 %v31, %v34
    %v36 = vmul.f32 %v33, %v34
    %v37 = vadd.f32 %v35, 1e-05
    %v38 = vadd.f32 %v36, 1e-05
    %v39 = vrsqrt.pop %v37
    %v40 = vrsqrt.pop %v38
    %v41 = vld [vmem:[%s1] sm:$0x1]
    %v43 = vlaneseq
    %v44 = vshrl.u32 %v43, 7
    %v45 = vsub.s32 0, %v44
    %v46 = vrot.slane %v41, %v45
    %v48 = vmul.f32 %v46, %v26
    %v49 = vmul.f32 %v46, %v27
    %v50 = vmul.f32 %v48, %v39
    %v51 = vmul.f32 %v49, %v40
    %52 = vst [vmem:[#allocation5] sm:$0xff] %v50
    %53 = vst [vmem:[#allocation5 + $0x8] sm:$0xff] %v51
    // Predicated region
    $region14: #{tpu_custom_call.1} parent=1 // pred_check
      _
    $region15: #{tpu_custom_call.1} parent=1 // pred_check_branch
      %55 = sbr.rel (0) target = $region17
    $region16: #{tpu_custom_call.1} parent=1 // pred_region
      %s57 = ssub.s32 256, 256
      %58 = vsyncadd [#allocation4], %s57
      %s59 = sshll.u32 [#allocation5], 4
      %s60 = int_to_ptr.vmem [resolvable:$true] %s59
      %65 = dma.vmem_to_hbm [thread:$0]  %s60, 256, %s2, [#allocation4], 128, 128, 8
    $region17: #{tpu_custom_call.1} parent=1 // pred_fallthru
      _
    // Predicated region
    $region18: #{tpu_custom_call.1} parent=1 // pred_check
      _
    $region19: #{tpu_custom_call.1} parent=1 // pred_check_branch
      %67 = sbr.rel (0) target = $region21
    $region20: #{tpu_custom_call.1} parent=1 // pred_region
      %68 = dma.done [#allocation4], 256
    $region21: #{tpu_custom_call.1} parent=1 // pred_fallthru
      _
    %69 = vsyncpa [#allocation3], 1
    %70 = vsyncpa [#allocation4], 1

</llo_original>
